<compile_context>
chip_gen: v6e
topology: v6e:2x2x1
jax: 0.10.0
libtpu: 0.0.40
codegen_flags: <defaults>
</compile_context>

<pallas_src>
import jax
import jax.numpy as jnp
from jax.experimental import pallas as pl
from jax.experimental.pallas import tpu as pltpu


def _round_up(x, m):
    return (x + m - 1) // m * m


def _discriminator_z_kernel(x_ref, w1_ref, b1_ref, w2_ref, b2_ref, o_ref):
    # linear1 on the MXU: (TILE_B, Z) @ (Z, H) with f32 accumulation.
    h = jnp.dot(x_ref[...], w1_ref[...], preferred_element_type=jnp.float32)
    h = h + b1_ref[...]                       # (1, H) broadcast, f32
    # LeakyReLU, PyTorch default negative_slope = 0.01
    h = jnp.where(h > 0, h, 0.01 * h)
    # linear2: N=1 matmul replaced by VPU multiply + XLU lane reduction.
    out = jnp.sum(h * w2_ref[...], axis=-1, keepdims=True)   # (TILE_B, 1) f32
    o_ref[...] = (out + b2_ref[0, 0]).astype(o_ref.dtype)


def discriminator_z_forward(x, w1, b1, w2, b2, *, compute_dtype=jnp.float32,
                            max_tile_b=512):
    """x: (B, z_dim); w1: (z_dim, H); b1: (H,); w2: (H, 1); b2: (1,).
       Returns (B, 1) float32 logits (no sigmoid, matching the PyTorch forward)."""
    B, Z = x.shape
    H = w1.shape[1]

    # MXU-friendly input dtypes (bf16 halves w1 HBM/VMEM traffic); post-matmul
    # math stays in f32.
    x = x.astype(compute_dtype)
    w1 = w1.astype(compute_dtype)
    b1_2d = b1.reshape(1, H).astype(jnp.float32)
    w2_row = w2.reshape(1, H).astype(jnp.float32)   # (H, 1) column -> (1, H) row
    b2_2d = b2.reshape(1, 1).astype(jnp.float32)

    # Batch tiling: multiple of 8 sublanes, capped so x/out tiles stay tiny.
    tile_b = min(max_tile_b, _round_up(B, 8))
    b_pad = _round_up(B, tile_b)
    if b_pad != B:
        x = jnp.pad(x, ((0, b_pad - B), (0, 0)))
    grid = (pl.cdiv(b_pad, tile_b),)

    # VMEM budget: resident w1/b1/w2 + double-buffered x/out tiles (+headroom).
    # TODO(synk): if z_dim grows so that w1 alone nears ~32 MiB, add an H-grid
    # axis and accumulate layer-2 partials instead of keeping w1 fully resident.
    itemsize = jnp.dtype(compute_dtype).itemsize
    vmem_need = (Z * H * itemsize            # w1
                 + 2 * H * 4                 # b1 + w2 row
                 + 2 * tile_b * Z * itemsize # double-buffered x tiles
                 + 2 * tile_b * 4)           # double-buffered out tiles
    vmem_limit = min(max(16 * 1024 * 1024, 2 * vmem_need), 64 * 1024 * 1024)

    out = pl.pallas_call(
        _discriminator_z_kernel,
        out_shape=jax.ShapeDtypeStruct((b_pad, 1), jnp.float32),
        grid=grid,
        in_specs=[
            pl.BlockSpec((tile_b, Z), lambda i: (i, 0)),   # x tile (pipelined)
            pl.BlockSpec((Z, H), lambda i: (0, 0)),        # w1 (resident)
            pl.BlockSpec((1, H), lambda i: (0, 0)),        # b1 (resident)
            pl.BlockSpec((1, H), lambda i: (0, 0)),        # w2 row (resident)
            pl.BlockSpec((1, 1), lambda i: (0, 0),
                         memory_space=pltpu.MemorySpace.SMEM),  # b2 scalar
        ],
        out_specs=pl.BlockSpec((tile_b, 1), lambda i: (i, 0)),
        compiler_params=pltpu.CompilerParams(
            dimension_semantics=("parallel",),
            vmem_limit_bytes=int(vmem_limit)),
    )(x, w1, b1_2d, w2_row, b2_2d)

    return out[:B]


def init_params(key, z_dim):
    """Deterministic synthetic init (PyTorch nn.Linear-like uniform bounds)."""
    hidden = z_dim * 64
    k1, k2, k3, k4 = jax.random.split(key, 4)
    bound1 = 1.0 / jnp.sqrt(z_dim)
    bound2 = 1.0 / jnp.sqrt(hidden)
    # stored as (in_features, out_features) for the kernel
    w1 = jax.random.uniform(k1, (z_dim, hidden), jnp.float32, -bound1, bound1)
    b1 = jax.random.uniform(k2, (hidden,), jnp.float32, -bound1, bound1)
    w2 = jax.random.uniform(k3, (hidden, 1), jnp.float32, -bound2, bound2)
    b2 = jax.random.uniform(k4, (1,), jnp.float32, -bound2, bound2)
    return w1, b1, w2, b2


def _reference(x, w1, b1, w2, b2):
    h = x @ w1 + b1
    h = jnp.where(h > 0, h, 0.01 * h)
    return h @ w2 + b2


if __name__ == "__main__":
    key = jax.random.PRNGKey(0)
    z_dim = 8          # hidden = z_dim * 64 = 512
    batch = 2

    kx, kp = jax.random.split(key)
    x = jax.random.normal(kx, (batch, z_dim), dtype=jnp.float32)
    w1, b1, w2, b2 = init_params(kp, z_dim)
    ref = _reference(x, w1, b1, w2, b2)

    # f32 path: exact module semantics, tight tolerance.
    out = jax.block_until_ready(discriminator_z_forward(x, w1, b1, w2, b2))
    assert out.shape == (batch, 1)
    assert jnp.allclose(out, ref, atol=1e-4, rtol=1e-5)

    # bf16 x/w1 path (v5e/v6e/v7x MXU-friendly), relaxed tolerance.
    out_bf16 = jax.block_until_ready(
        discriminator_z_forward(x, w1, b1, w2, b2, compute_dtype=jnp.bfloat16))
    assert out_bf16.shape == (batch, 1)
    assert jnp.allclose(out_bf16, ref, atol=5e-2, rtol=5e-2)

    # Larger ragged batch: exercises the multi-step grid, padding, and
    # resident-weight pipelining.
    kx2, _ = jax.random.split(kx)
    big_b = 1037
    x_big = jax.random.normal(kx2, (big_b, z_dim), dtype=jnp.float32)
    ref_big = _reference(x_big, w1, b1, w2, b2)
    out_big = jax.block_until_ready(
        discriminator_z_forward(x_big, w1, b1, w2, b2))
    assert out_big.shape == (big_b, 1)
    assert jnp.allclose(out_big, ref_big, atol=1e-4, rtol=1e-5)

    print("KERNEL_OK")
</pallas_src>

<mosaic_0001>
module attributes {stable_mosaic.version = 11 : i64} {
  func.func @_discriminator_z_kernel(%arg0: i32, %arg1: memref<8x8xf32, #tpu.memory_space<vmem>>, %arg2: memref<8x512xf32, #tpu.memory_space<vmem>>, %arg3: memref<1x512xf32, #tpu.memory_space<vmem>>, %arg4: memref<1x512xf32, #tpu.memory_space<vmem>>, %arg5: memref<1x1xf32, #tpu.memory_space<smem>>, %arg6: memref<8x1xf32, #tpu.memory_space<vmem>>) attributes {dimension_semantics = [#tpu.dimension_semantics<parallel>], iteration_bounds = array<i64: 1>, scalar_prefetch = 0 : i64, scratch_operands = 0 : i64, tpu.core_type = #tpu.core_type<tc>, window_params = [{transform_indices = @transform_0, window_bounds = array<i64: 8, 8>}, {pipeline_mode = #tpu.pipeline_mode<synchronous>, transform_indices = @transform_1, window_bounds = array<i64: 8, 512>}, {pipeline_mode = #tpu.pipeline_mode<synchronous>, transform_indices = @transform_2, window_bounds = array<i64: 1, 512>}, {pipeline_mode = #tpu.pipeline_mode<synchronous>, transform_indices = @transform_3, window_bounds = array<i64: 1, 512>}, {transform_indices = @transform_4, window_bounds = array<i64: 1, 1>}, {transform_indices = @transform_5, window_bounds = array<i64: 8, 1>}]} {
    %c0 = arith.constant 0 : index
    %c0_0 = arith.constant 0 : index
    %0 = vector.load %arg1[%c0, %c0_0] : memref<8x8xf32, #tpu.memory_space<vmem>>, vector<8x8xf32>
    %c0_1 = arith.constant 0 : index
    %c0_2 = arith.constant 0 : index
    %1 = vector.load %arg2[%c0_1, %c0_2] : memref<8x512xf32, #tpu.memory_space<vmem>>, vector<8x512xf32>
    %cst = arith.constant dense<0.000000e+00> : vector<8x512xf32>
    %2 = tpu.matmul %0, %1, %cst {dimension_numbers = #tpu.dot_dimension_numbers<[1], [0], [0], [1], [0, 0, 1, 1], [], []>} : vector<8x8xf32>, vector<8x512xf32>, vector<8x512xf32> -> vector<8x512xf32>
    %c0_3 = arith.constant 0 : index
    %c0_4 = arith.constant 0 : index
    %3 = vector.load %arg3[%c0_3, %c0_4] : memref<1x512xf32, #tpu.memory_space<vmem>>, vector<1x512xf32>
    %4 = vector.broadcast %3 : vector<1x512xf32> to vector<8x512xf32>
    %5 = arith.addf %2, %4 : vector<8x512xf32>
    %cst_5 = arith.constant 0.000000e+00 : f32
    %6 = vector.broadcast %cst_5 : f32 to vector<8x512xf32>
    %7 = arith.cmpf ogt, %5, %6 : vector<8x512xf32>
    %cst_6 = arith.constant 0.00999999977 : f32
    %8 = vector.broadcast %cst_6 : f32 to vector<8x512xf32>
    %9 = arith.mulf %8, %5 : vector<8x512xf32>
    %10 = arith.select %7, %5, %9 : vector<8x512xi1>, vector<8x512xf32>
    %c0_7 = arith.constant 0 : index
    %c0_8 = arith.constant 0 : index
    %11 = vector.load %arg4[%c0_7, %c0_8] : memref<1x512xf32, #tpu.memory_space<vmem>>, vector<1x512xf32>
    %12 = vector.broadcast %11 : vector<1x512xf32> to vector<8x512xf32>
    %13 = arith.mulf %10, %12 : vector<8x512xf32>
    %cst_9 = arith.constant dense<0.000000e+00> : vector<8xf32>
    %14 = vector.multi_reduction <add>, %13, %cst_9 [1] : vector<8x512xf32> to vector<8xf32>
    %15 = vector.shape_cast %14 : vector<8xf32> to vector<8x1xf32>
    %c0_10 = arith.constant 0 : index
    %c0_11 = arith.constant 0 : index
    %16 = memref.load %arg5[%c0_10, %c0_11] : memref<1x1xf32, #tpu.memory_space<smem>>
    %17 = vector.broadcast %16 : f32 to vector<8x1xf32>
    %18 = arith.addf %15, %17 : vector<8x1xf32>
    %c0_12 = arith.constant 0 : index
    %c0_13 = arith.constant 0 : index
    %19 = vector.load %arg6[%c0_12, %c0_13] : memref<8x1xf32, #tpu.memory_space<vmem>>, vector<8x1xf32>
    tpu.vector_store %arg6[%c0_12, %c0_13], %18 {strides = array<i32>} : memref<8x1xf32, #tpu.memory_space<vmem>>, vector<8x1xf32>,
    return
  }
  func.func @transform_0(%arg0: i32) -> (i32, i32) {
    %c0_i32 = arith.constant 0 : i32
    %c0_i32_0 = arith.constant 0 : i32
    return %arg0, %c0_i32 : i32, i32
  }
  func.func @transform_1(%arg0: i32) -> (i32, i32) {
    %c0_i32 = arith.constant 0 : i32
    %c0_i32_0 = arith.constant 0 : i32
    %c0_i32_1 = arith.constant 0 : i32
    return %c0_i32, %c0_i32_0 : i32, i32
  }
  func.func @transform_2(%arg0: i32) -> (i32, i32) {
    %c0_i32 = arith.constant 0 : i32
    %c0_i32_0 = arith.constant 0 : i32
    %c0_i32_1 = arith.constant 0 : i32
    return %c0_i32, %c0_i32_0 : i32, i32
  }
  func.func @transform_3(%arg0: i32) -> (i32, i32) {
    %c0_i32 = arith.constant 0 : i32
    %c0_i32_0 = arith.constant 0 : i32
    %c0_i32_1 = arith.constant 0 : i32
    return %c0_i32, %c0_i32_0 : i32, i32
  }
  func.func @transform_4(%arg0: i32) -> (i32, i32) {
    %c0_i32 = arith.constant 0 : i32
    %c0_i32_0 = arith.constant 0 : i32
    %c0_i32_1 = arith.constant 0 : i32
    return %c0_i32, %c0_i32_0 : i32, i32
  }
  func.func @transform_5(%arg0: i32) -> (i32, i32) {
    %c0_i32 = arith.constant 0 : i32
    %c0_i32_0 = arith.constant 0 : i32
    return %arg0, %c0_i32 : i32, i32
  }
}

</mosaic_0001>

<llo_original>
// kernel: tpu_custom_call.1
$region0: #{tpu_custom_call.1}
  #allocation0 [shape = 'u32[]', space=smem, size = 0x4, offset = 0x4, fixed_abs, tag = 'smem constant byte address 0x4 - core index']
  #allocation1 [shape = 'u32[144,128]{1,0:T(1,128)}', space=vmem, size = 0x12000, scoped, tag = 'internal scratch']
  #allocation2 [shape = 'f32[1,1]{1,0:T(1,128)S(6)}', space=smem, size = 0x200, scoped, tag = 'scoped memory for tpu_custom_call.1']
  %s0 = inlined_call_operand.hbm [shape: f32[8,8], index: 0, kind: input, shape index: {}]
  %s1 = inlined_call_operand.hbm [shape: f32[8,512], index: 1, kind: input, shape index: {}]
  %s2 = inlined_call_operand.vmem [shape: f32[1,512], index: 2, kind: input, shape index: {}]
  %s3 = inlined_call_operand.hbm [shape: f32[1,512], index: 3, kind: input, shape index: {}]
  %s4 = inlined_call_operand.<no memory space> [shape: f32[1,1], index: 4, kind: input, shape index: {}]
  %s5 = inlined_call_operand.vmem [shape: f32[8,1], index: 5, kind: output, shape index: {}]
  %s6 = sld [smem:[#allocation0]]
  $region42: #{tpu_custom_call.1} parent=0
    _
  %s8 = ssub.s32 1, %s6
  %s9 = scalar_select 0, %s8, %s6
  %10 = sst [smem:[#allocation2]] %s4
  $region1: #{tpu_custom_call.1} parent=0
    #allocation3 [shape = 'u8[4096]{0}', space=vmem, size = 0x1000, scoped, tag = 'input window, operand 0, single buffered']
    #allocation4 [shape = 's32[1]{0}', space=sflag, size = 0x4, scoped, tag = 'scoped memory for tpu_custom_call.1']
    #allocation5 [shape = 'u8[16384]{0}', space=vmem, size = 0x4000, scoped, tag = 'input window, operand 1, single buffered']
    #allocation6 [shape = 's32[1]{0}', space=sflag, size = 0x4, scoped, tag = 'scoped memory for tpu_custom_call.1']
    #allocation7 [shape = 'u8[2048]{0}', space=vmem, size = 0x800, scoped, tag = 'input window, operand 3, single buffered']
    %11 = vsyncpa [#allocation4], 0
    %12 = vsyncpa [#allocation6], 0
    // Predicated region
    $region2: #{tpu_custom_call.1} parent=1 // pred_check
      _
    $region3: #{tpu_custom_call.1} parent=1 // pred_check_branch
      %14 = sbr.rel (0) target = $region5
    $region4: #{tpu_custom_call.1} parent=1 // pred_region
      %s16 = ssub.s32 128, 128
      %17 = vsyncadd [#allocation4], %s16
      %s19 = sshll.u32 [#allocation3], 4
      %s20 = int_to_ptr.vmem [resolvable:$true] %s19
      %22 = dma.hbm_to_vmem [thread:$0]  %s0, 128, %s20, [#allocation4]
    $region5: #{tpu_custom_call.1} parent=1 // pred_fallthru
      _
    // Predicated region
    $region6: #{tpu_custom_call.1} parent=1 // pred_check
      _
    $region7: #{tpu_custom_call.1} parent=1 // pred_check_branch
      %24 = sbr.rel (0) target = $region9
    $region8: #{tpu_custom_call.1} parent=1 // pred_region
      %s26 = ssub.s32 512, 512
      %27 = vsyncadd [#allocation6], %s26
      %s29 = sshll.u32 [#allocation5], 4
      %s30 = int_to_ptr.vmem [resolvable:$true] %s29
      %32 = dma.hbm_to_vmem [thread:$0]  %s1, 512, %s30, [#allocation6]
    $region9: #{tpu_custom_call.1} parent=1 // pred_fallthru
      _
    // Predicated region
    $region10: #{tpu_custom_call.1} parent=1 // pred_check
      _
    $region11: #{tpu_custom_call.1} parent=1 // pred_check_branch
      %34 = sbr.rel (0) target = $region13
    $region12: #{tpu_custom_call.1} parent=1 // pred_region
      _
    $region13: #{tpu_custom_call.1} parent=1 // pred_fallthru
      _
    // Predicated region
    $region14: #{tpu_custom_call.1} parent=1 // pred_check
      _
    $region15: #{tpu_custom_call.1} parent=1 // pred_check_branch
      %36 = sbr.rel (0) target = $region17
    $region16: #{tpu_custom_call.1} parent=1 // pred_region
      %s38 = ssub.s32 64, 64
      %39 = vsyncadd [#allocation6], %s38
      %s41 = sshll.u32 [#allocation7], 4
      %s42 = int_to_ptr.vmem [resolvable:$true] %s41
      %44 = dma.hbm_to_vmem [thread:$0]  %s3, 64, %s42, [#allocation6]
    $region17: #{tpu_custom_call.1} parent=1 // pred_fallthru
      _
    // Predicated region
    $region18: #{tpu_custom_call.1} parent=1 // pred_check
      _
    $region19: #{tpu_custom_call.1} parent=1 // pred_check_branch
      %46 = sbr.rel (0) target = $region21
    $region20: #{tpu_custom_call.1} parent=1 // pred_region
      _
    $region21: #{tpu_custom_call.1} parent=1 // pred_fallthru
      _
    // Predicated region
    $region22: #{tpu_custom_call.1} parent=1 // pred_check
      _
    $region23: #{tpu_custom_call.1} parent=1 // pred_check_branch
      %48 = sbr.rel (0) target = $region25
    $region24: #{tpu_custom_call.1} parent=1 // pred_region
      %49 = dma.done [#allocation4], 128
    $region25: #{tpu_custom_call.1} parent=1 // pred_fallthru
      _
    // Predicated region
    $region26: #{tpu_custom_call.1} parent=1 // pred_check
      _
    $region27: #{tpu_custom_call.1} parent=1 // pred_check_branch
      %51 = sbr.rel (0) target = $region29
    $region28: #{tpu_custom_call.1} parent=1 // pred_region
      %52 = dma.done [#allocation6], 512
    $region29: #{tpu_custom_call.1} parent=1 // pred_fallthru
      _
    // Predicated region
    $region30: #{tpu_custom_call.1} parent=1 // pred_check
      _
    $region31: #{tpu_custom_call.1} parent=1 // pred_check_branch
      %54 = sbr.rel (0) target = $region33
    $region32: #{tpu_custom_call.1} parent=1 // pred_region
      %55 = dma.done [#allocation6], 64
    $region33: #{tpu_custom_call.1} parent=1 // pred_fallthru
      _
    %v56 = vld [vmem:[#allocation3] sm:$0xff]
    %v57 = vld [vmem:[#allocation5] sm:$0xff]
    %v58 = vld [vmem:[#allocation5 + $0x8] sm:$0xff]
    %v59 = vld [vmem:[#allocation5 + $0x10] sm:$0xff]
    %v60 = vld [vmem:[#allocation5 + $0x18] sm:$0xff]
    %v61 = vld [vmem:[%s2] sm:$0xf]
    %v63 = vlaneseq
    %v64 = vshrl.u32 %v63, 7
    %v65 = vsub.s32 0, %v64
    %v66 = vrot.slane %v61, %v65
    %v67 = vlaneseq
    %v68 = vshrl.u32 %v67, 7
    %v69 = vsub.s32 1, %v68
    %v70 = vrot.slane %v61, %v69
    %v71 = vlaneseq
    %v72 = vshrl.u32 %v71, 7
    %v73 = vsub.s32 2, %v72
    %v74 = vrot.slane %v61, %v73
    %v75 = vlaneseq
    %v76 = vshrl.u32 %v75, 7
    %v77 = vsub.s32 3, %v76
    %v78 = vrot.slane %v61, %v77
    %vm83 = vcmask 64512
    %v85 = vsel %vm83, %v56, 0
    %87 = vmatprep.subr.mxu0 0.0
    %88 = vmatpush1.msra.mxu0 0.0
    %89 = vmatprep.subr.mxu0 0.0
    %90 = vmatpush1.msra.mxu0 0.0
    %91 = vmatprep.subr.mxu0 0.0
    %92 = vmatpush1.msra.mxu0 0.0
    %93 = vmatprep.subr.mxu0 0.0
    %94 = vmatpush1.msra.mxu0 0.0
    %95 = vmatprep.subr.mxu0 0.0
    %96 = vmatpush1.msra.mxu0 0.0
    %97 = vmatprep.subr.mxu0 0.0
    %98 = vmatpush1.msra.mxu0 0.0
    %99 = vmatprep.subr.mxu0 0.0
    %100 = vmatpush1.msra.mxu0 0.0
    %101 = vmatprep.subr.mxu0 0.0
    %102 = vmatpush1.msra.mxu0 0.0
    %103 = vmatprep.subr.mxu0 0.0
    %104 = vmatpush1.msra.mxu0 0.0
    %105 = vmatprep.subr.mxu0 0.0
    %106 = vmatpush1.msra.mxu0 0.0
    %107 = vmatprep.subr.mxu0 0.0
    %108 = vmatpush1.msra.mxu0 0.0
    %109 = vmatprep.subr.mxu0 0.0
    %110 = vmatpush1.msra.mxu0 0.0
    %111 = vmatprep.subr.mxu0 0.0
    %112 = vmatpush1.msra.mxu0 0.0
    %113 = vmatprep.subr.mxu0 0.0
    %114 = vmatpush1.msra.mxu0 0.0
    %115 = vmatprep.subr.mxu0 0.0
    %116 = vmatpush1.msra.mxu0 0.0
    %117 = vmatprep.subr.mxu0 %v58
    %118 = vmatpush1.msra.mxu0 %v57
    %119 = vmatprep.subr.mxu0 0.0
    %120 = vmatpush2.msra.mxu0 0.0
    %121 = vmatprep.subr.mxu0 0.0
    %122 = vmatpush2.msra.mxu0 0.0
    %123 = vmatprep.subr.mxu0 0.0
    %124 = vmatpush2.msra.mxu0 0.0
    %125 = vmatprep.subr.mxu0 0.0
    %126 = vmatpush2.msra.mxu0 0.0
    %127 = vmatprep.subr.mxu0 0.0
    %128 = vmatpush2.msra.mxu0 0.0
    %129 = vmatprep.subr.mxu0 0.0
    %130 = vmatpush2.msra.mxu0 0.0
    %131 = vmatprep.subr.mxu0 0.0
    %132 = vmatpush2.msra.mxu0 0.0
    %133 = vmatprep.subr.mxu0 0.0
    %134 = vmatpush2.msra.mxu0 0.0
    %135 = vmatprep.subr.mxu0 0.0
    %136 = vmatpush2.msra.mxu0 0.0
    %137 = vmatprep.subr.mxu0 0.0
    %138 = vmatpush2.msra.mxu0 0.0
    %139 = vmatprep.subr.mxu0 0.0
    %140 = vmatpush2.msra.mxu0 0.0
    %141 = vmatprep.subr.mxu0 0.0
    %142 = vmatpush2.msra.mxu0 0.0
    %143 = vmatprep.subr.mxu0 0.0
    %144 = vmatpush2.msra.mxu0 0.0
    %145 = vmatprep.subr.mxu0 0.0
    %146 = vmatpush2.msra.mxu0 0.0
    %147 = vmatprep.subr.mxu0 0.0
    %148 = vmatpush2.msra.mxu0 0.0
    %149 = vmatprep.subr.mxu0 0.0
    %150 = vmatpush2.msra.mxu0 0.0
    %151 = vmatprep.mubr.f32.mxu0 0.0
    %152 = vmatmul.mubr.f32.gmra.mxu0 %v85
    %v153 = vpop.f32.mrf.mxu0
    %v154 = vadd.f32 %v66, %v153
    %v155 = vpop.f32.mrf.mxu0
    %v156 = vadd.f32 %v70, %v155
    %157 = vdwg.mxu0
    %158 = vmatprep.subr.mxu0 0.0
    %159 = vmatpush1.msra.mxu0 0.0
    %160 = vmatprep.subr.mxu0 0.0
    %161 = vmatpush1.msra.mxu0 0.0
    %162 = vmatprep.subr.mxu0 0.0
    %163 = vmatpush1.msra.mxu0 0.0
    %164 = vmatprep.subr.mxu0 0.0
    %165 = vmatpush1.msra.mxu0 0.0
    %166 = vmatprep.subr.mxu0 0.0
    %167 = vmatpush1.msra.mxu0 0.0
    %168 = vmatprep.subr.mxu0 0.0
    %169 = vmatpush1.msra.mxu0 0.0
    %170 = vmatprep.subr.mxu0 0.0
    %171 = vmatpush1.msra.mxu0 0.0
    %172 = vmatprep.subr.mxu0 0.0
    %173 = vmatpush1.msra.mxu0 0.0
    %174 = vmatprep.subr.mxu0 0.0
    %175 = vmatpush1.msra.mxu0 0.0
    %176 = vmatprep.subr.mxu0 0.0
    %177 = vmatpush1.msra.mxu0 0.0
    %178 = vmatprep.subr.mxu0 0.0
    %179 = vmatpush1.msra.mxu0 0.0
    %180 = vmatprep.subr.mxu0 0.0
    %181 = vmatpush1.msra.mxu0 0.0
    %182 = vmatprep.subr.mxu0 0.0
    %183 = vmatpush1.msra.mxu0 0.0
    %184 = vmatprep.subr.mxu0 0.0
    %185 = vmatpush1.msra.mxu0 0.0
    %186 = vmatprep.subr.mxu0 0.0
    %187 = vmatpush1.msra.mxu0 0.0
    %188 = vmatprep.subr.mxu0 %v60
    %189 = vmatpush1.msra.mxu0 %v59
    %190 = vmatprep.subr.mxu0 0.0
    %191 = vmatpush2.msra.mxu0 0.0
    %192 = vmatprep.subr.mxu0 0.0
    %193 = vmatpush2.msra.mxu0 0.0
    %194 = vmatprep.subr.mxu0 0.0
    %195 = vmatpush2.msra.mxu0 0.0
    %196 = vmatprep.subr.mxu0 0.0
    %197 = vmatpush2.msra.mxu0 0.0
    %198 = vmatprep.subr.mxu0 0.0
    %199 = vmatpush2.msra.mxu0 0.0
    %200 = vmatprep.subr.mxu0 0.0
    %201 = vmatpush2.msra.mxu0 0.0
    %202 = vmatprep.subr.mxu0 0.0
    %203 = vmatpush2.msra.mxu0 0.0
    %204 = vmatprep.subr.mxu0 0.0
    %205 = vmatpush2.msra.mxu0 0.0
    %206 = vmatprep.subr.mxu0 0.0
    %207 = vmatpush2.msra.mxu0 0.0
    %208 = vmatprep.subr.mxu0 0.0
    %209 = vmatpush2.msra.mxu0 0.0
    %210 = vmatprep.subr.mxu0 0.0
    %211 = vmatpush2.msra.mxu0 0.0
    %212 = vmatprep.subr.mxu0 0.0
    %213 = vmatpush2.msra.mxu0 0.0
    %214 = vmatprep.subr.mxu0 0.0
    %215 = vmatpush2.msra.mxu0 0.0
    %216 = vmatprep.subr.mxu0 0.0
    %217 = vmatpush2.msra.mxu0 0.0
    %218 = vmatprep.subr.mxu0 0.0
    %219 = vmatpush2.msra.mxu0 0.0
    %220 = vmatprep.subr.mxu0 0.0
    %221 = vmatpush2.msra.mxu0 0.0
    %222 = vmatprep.mubr.f32.mxu0 0.0
    %223 = vmatmul.mubr.f32.gmra.mxu0 %v85
    %v224 = vpop.f32.mrf.mxu0
    %v225 = vadd.f32 %v74, %v224
    %v226 = vpop.f32.mrf.mxu0
    %v227 = vadd.f32 %v78, %v226
    %228 = vdwg.mxu0
    %vm229 = vcmp.gt.f32.partialorder %v154, 0.0
    %vm230 = vcmp.gt.f32.partialorder %v156, 0.0
    %vm231 = vcmp.gt.f32.partialorder %v225, 0.0
    %vm232 = vcmp.gt.f32.partialorder %v227, 0.0
    %v233 = vmul.f32 %v154, 0.01
    %v234 = vmul.f32 %v156, 0.01
    %v235 = vmul.f32 %v225, 0.01
    %v236 = vmul.f32 %v227, 0.01
    %v237 = vsel %vm229, %v154, %v233
    %v238 = vsel %vm230, %v156, %v234
    %v239 = vsel %vm231, %v225, %v235
    %v240 = vsel %vm232, %v227, %v236
    %v241 = vld [vmem:[#allocation7] sm:$0xf]
    %v243 = vlaneseq
    %v244 = vshrl.u32 %v243, 7
    %v245 = vsub.s32 0, %v244
    %v246 = vrot.slane %v241, %v245
    %v247 = vlaneseq
    %v248 = vshrl.u32 %v247, 7
    %v249 = vsub.s32 1, %v248
    %v250 = vrot.slane %v241, %v249
    %v251 = vlaneseq
    %v252 = vshrl.u32 %v251, 7
    %v253 = vsub.s32 2, %v252
    %v254 = vrot.slane %v241, %v253
    %v255 = vlaneseq
    %v256 = vshrl.u32 %v255, 7
    %v257 = vsub.s32 3, %v256
    %v258 = vrot.slane %v241, %v257
    %v263 = vmul.f32 %v237, %v246
    %v264 = vmul.f32 %v238, %v250
    %v265 = vmul.f32 %v239, %v254
    %v266 = vmul.f32 %v240, %v258
    %v267 = vadd.f32 %v263, %v264
    %v268 = vadd.f32 %v267, %v265
    %v269 = vadd.f32 %v268, %v266
    %270 = vadd.xlane.f32.xlu0 %v269
    %v271 = vpop.xlane.xlu0 %270
    %s272 = sld [smem:[#allocation2]]
    %v273 = vstv %s272
    %v274 = vadd.f32 %v271, %v273
    %vm275 = vcmask 7168
    %276 = vst.msk [vmem:[%s5] sm:$0xff] %vm275, %v274
    // Predicated region
    $region34: #{tpu_custom_call.1} parent=1 // pred_check
      _
    $region35: #{tpu_custom_call.1} parent=1 // pred_check_branch
      %278 = sbr.rel (0) target = $region37
    $region36: #{tpu_custom_call.1} parent=1 // pred_region
      _
    $region37: #{tpu_custom_call.1} parent=1 // pred_fallthru
      _
    // Predicated region
    $region38: #{tpu_custom_call.1} parent=1 // pred_check
      _
    $region39: #{tpu_custom_call.1} parent=1 // pred_check_branch
      %280 = sbr.rel (0) target = $region41
    $region40: #{tpu_custom_call.1} parent=1 // pred_region
      _
    $region41: #{tpu_custom_call.1} parent=1 // pred_fallthru
      _
    %281 = vsyncpa [#allocation4], 1
    %282 = vsyncpa [#allocation6], 1

</llo_original>
